<compile_context>
chip_gen: v5e
topology: v5e:2x2
jax: 0.10.0
libtpu: 0.0.40
codegen_flags: <defaults>
</compile_context>

<pallas_src>
import functools

import jax
import jax.numpy as jnp
from jax.experimental import pallas as pl
from jax.experimental.pallas import tpu as pltpu


def _residual_dense_kernel(x_ref, w_ref, b_ref, o_ref, *, col_axis, tn, cast_to_bf16):
    """o = (x @ W_coltile + b_coltile) + x_coltile for one (tm, tn) output tile.

    x_ref : (tm, Dp)  full-width row tile of x (MXU LHS; residual sliced from it)
    w_ref : (Dp, tn)  column tile of W
    b_ref : (1, tn)   column tile of bias
    o_ref : (tm, tn)
    """
    # Residual term: reuse the already-resident LHS tile (128-lane aligned slice).
    col0 = pl.multiple_of(pl.program_id(col_axis) * tn, 128)
    xc = x_ref[:, pl.ds(col0, tn)]

    lhs = x_ref[...]
    rhs = w_ref[...]
    if cast_to_bf16:
        lhs = lhs.astype(jnp.bfloat16)
        rhs = rhs.astype(jnp.bfloat16)
    # Native-dtype MXU matmul with f32 accumulation.
    y = jnp.dot(lhs, rhs, preferred_element_type=jnp.float32)
    # Bias + residual on the f32 accumulator, then a single downcast.
    y = y + b_ref[...] + xc
    o_ref[...] = y.astype(o_ref.dtype)


def _round_up(x, mult):
    return ((x + mult - 1) // mult) * mult


def _vmem_limit_bytes():
    """Generation-aware VMEM limit: ~3/4 of physical capacity."""
    cap = 128 * 1024 * 1024
    try:
        info = pltpu.get_tpu_info()
        cap = int(getattr(info, "vmem_capacity_bytes", cap))
    except Exception:
        pass
    return (cap * 3) // 4


def _largest_col_tile(d_pad, cap):
    """Largest multiple of 128 <= cap that divides d_pad."""
    t = min(cap, d_pad)
    t = max((t // 128) * 128, 128)
    while t > 128 and d_pad % t != 0:
        t -= 128
    return t


def _choose_tiles(m, d_pad, itemsize, vmem_budget):
    pack = max(8, 32 // itemsize)          # sublane packing: 8 f32 / 16 bf16 / 32 i8
    tm_max = 512 if itemsize >= 4 else 1024
    tn_max = 512

    tn = _largest_col_tile(d_pad, tn_max)
    tm = min(tm_max, _round_up(m, pack))

    def fits(tm_, tn_):
        # Double-buffered full-width LHS row tile, W column tile, output tile, bias.
        need = 2 * (tm_ * d_pad + d_pad * tn_ + tm_ * tn_ + tn_) * itemsize
        return need <= vmem_budget

    while not fits(tm, tn) and tm > pack:
        tm = max(pack, _round_up(tm // 2, pack))
    while not fits(tm, tn) and tn > 128:
        tn = _largest_col_tile(d_pad, tn - 128)
    # TODO(synk): for very large D (full-width LHS alone exceeding v7x's 64 MiB
    # VMEM) add a K reduction grid axis with an f32 accumulator scratch.

    # Avoid a degenerate 1x1 grid for non-trivial row counts so both v7x
    # TensorCores (parallel axes) get a block.
    if pl.cdiv(m, tm) * (d_pad // tn) == 1 and m >= 256:
        tm = max(pack, _round_up(pl.cdiv(m, 2), pack))
    return tm, tn


def residual_dense(x, w, b, *, cast_to_bf16=False):
    """out = fn(x) + x with fn(x) = x @ w + b, fused in one Pallas kernel.

    x: (batch, seq, dim)   w: (dim, dim)   b: (dim,)
    """
    batch, seq, dim = x.shape
    m = batch * seq
    x2 = x.reshape(m, dim)
    b2 = b.reshape(1, dim)

    # Lane-dense feature/K dim: zero-pad D up to a multiple of 128 (explicit so
    # padded K lanes contribute exactly zero to the dot). Rows are NOT padded:
    # the ragged last row block is handled by Pallas' masked output stores.
    d_pad = pl.cdiv(dim, 128) * 128
    if d_pad != dim:
        x2 = jnp.pad(x2, ((0, 0), (0, d_pad - dim)))
        w = jnp.pad(w, ((0, d_pad - dim), (0, d_pad - dim)))
        b2 = jnp.pad(b2, ((0, 0), (0, d_pad - dim)))

    itemsize = jnp.dtype(x.dtype).itemsize
    vmem_limit = _vmem_limit_bytes()
    tm, tn = _choose_tiles(m, d_pad, itemsize, (vmem_limit * 9) // 10)

    n_rows = pl.cdiv(m, tm)
    n_cols = d_pad // tn

    # Grid order minimizing redundant HBM reads:
    #   A (col-inner): W re-streamed once per row block, x read once.
    #   B (row-inner): x re-streamed once per column block, W read once.
    traffic_a = n_rows * d_pad * d_pad + m * d_pad
    traffic_b = d_pad * d_pad + n_cols * m * d_pad
    if traffic_a <= traffic_b:
        grid = (n_rows, n_cols)
        x_map = lambda i, j: (i, 0)
        w_map = lambda i, j: (0, j)
        b_map = lambda i, j: (0, j)
        o_map = lambda i, j: (i, j)
        col_axis = 1
    else:
        grid = (n_cols, n_rows)
        x_map = lambda j, i: (i, 0)
        w_map = lambda j, i: (0, j)
        b_map = lambda j, i: (0, j)
        o_map = lambda j, i: (i, j)
        col_axis = 0

    kernel = functools.partial(
        _residual_dense_kernel, col_axis=col_axis, tn=tn, cast_to_bf16=cast_to_bf16)

    out2 = pl.pallas_call(
        kernel,
        out_shape=jax.ShapeDtypeStruct((m, d_pad), x.dtype),
        grid_spec=pltpu.PrefetchScalarGridSpec(
            num_scalar_prefetch=0,
            grid=grid,
            in_specs=[
                pl.BlockSpec((tm, d_pad), x_map),   # full-width x row tile (LHS + residual)
                pl.BlockSpec((d_pad, tn), w_map),   # W column tile
                pl.BlockSpec((1, tn), b_map),       # bias column tile
            ],
            out_specs=pl.BlockSpec((tm, tn), o_map),
        ),
        compiler_params=pltpu.CompilerParams(
            dimension_semantics=("parallel", "parallel"),
            vmem_limit_bytes=vmem_limit,
        ),
    )(x2, w, b2)

    if d_pad != dim:
        out2 = out2[:, :dim]
    return out2.reshape(batch, seq, dim)


class Residual:
    """JAX analogue of the PyTorch Residual module: out = fn(x) + x.

    For the canonical CTFN dense fn, matmul + bias + residual are fused in one
    Pallas kernel.
    """
    # TODO(synk): for an arbitrary user-supplied `fn` only the trailing `+ x`
    # could be fused; here `fn` is instantiated as the CTFN dense sub-layer.

    def __init__(self, w, b, *, cast_to_bf16=False):
        self.w = w
        self.b = b
        self.cast_to_bf16 = cast_to_bf16

    def __call__(self, x):
        return residual_dense(x, self.w, self.b, cast_to_bf16=self.cast_to_bf16)


def _reference(x, w, b):
    return jnp.einsum("bsd,de->bse", x, w) + b + x


if __name__ == "__main__":
    key = jax.random.PRNGKey(0)

    # ---- primary check: tile/lane-aligned f32 shapes -----------------------
    batch, seq, dim = 2, 256, 256
    kx, kw, kb = jax.random.split(key, 3)
    x = jax.random.normal(kx, (batch, seq, dim), dtype=jnp.float32)
    w = jax.random.normal(kw, (dim, dim), dtype=jnp.float32) * 0.02
    b = jax.random.normal(kb, (dim,), dtype=jnp.float32) * 0.02

    out = jax.block_until_ready(Residual(w, b)(x))
    ref = _reference(x, w, b)
    assert out.shape == x.shape and out.dtype == x.dtype
    assert jnp.allclose(out, ref, atol=1e-4, rtol=1e-4), "mismatch (f32 aligned)"

    # ---- small odd shape: exercises feature-dim padding + single tile ------
    batch2, seq2, dim2 = 2, 8, 32
    kx2, kw2, kb2 = jax.random.split(jax.random.PRNGKey(1), 3)
    xs = jax.random.normal(kx2, (batch2, seq2, dim2), dtype=jnp.float32)
    ws = jax.random.normal(kw2, (dim2, dim2), dtype=jnp.float32) * 0.02
    bs = jax.random.normal(kb2, (dim2,), dtype=jnp.float32) * 0.02

    out_s = jax.block_until_ready(Residual(ws, bs)(xs))
    ref_s = _reference(xs, ws, bs)
    assert out_s.shape == xs.shape and out_s.dtype == xs.dtype
    assert jnp.allclose(out_s, ref_s, atol=1e-4, rtol=1e-4), "mismatch (padded path)"

    # ---- bf16 native-MXU path (loose tolerance for bf16 rounding) ----------
    xb = x.astype(jnp.bfloat16)
    wb = w.astype(jnp.bfloat16)
    bb = b.astype(jnp.bfloat16)
    out_b = jax.block_until_ready(Residual(wb, bb)(xb))
    ref_b = _reference(xb.astype(jnp.float32), wb.astype(jnp.float32),
                       bb.astype(jnp.float32))
    assert out_b.dtype == jnp.bfloat16
    assert jnp.allclose(out_b.astype(jnp.float32), ref_b, atol=5e-2, rtol=5e-2), \
        "mismatch (bf16)"

    print("KERNEL_OK")
</pallas_src>

<mosaic_0001>
module attributes {stable_mosaic.version = 11 : i64} {
  func.func @_residual_dense_kernel(%arg0: i32, %arg1: i32, %arg2: memref<256x256xf32, #tpu.memory_space<vmem>>, %arg3: memref<256x256xf32, #tpu.memory_space<vmem>>, %arg4: memref<1x256xf32, #tpu.memory_space<vmem>>, %arg5: memref<256x256xf32, #tpu.memory_space<vmem>>) attributes {dimension_semantics = [#tpu.dimension_semantics<parallel>, #tpu.dimension_semantics<parallel>], iteration_bounds = array<i64: 1, 2>, scalar_prefetch = 0 : i64, scratch_operands = 0 : i64, tpu.core_type = #tpu.core_type<tc>, window_params = [{transform_indices = @transform_0, window_bounds = array<i64: 256, 256>}, {transform_indices = @transform_1, window_bounds = array<i64: 256, 256>}, {transform_indices = @transform_2, window_bounds = array<i64: 1, 256>}, {transform_indices = @transform_3, window_bounds = array<i64: 256, 256>}]} {
    %c256_i32 = arith.constant 256 : i32
    %0 = arith.muli %arg0, %c256_i32 : i32
    %1 = tpu.assume_multiple %0, 128 : i32
    %c0 = arith.constant 0 : index
    %2 = arith.index_cast %1 : i32 to index
    %3 = vector.load %arg2[%c0, %2] : memref<256x256xf32, #tpu.memory_space<vmem>>, vector<256x256xf32>
    %c0_0 = arith.constant 0 : index
    %c0_1 = arith.constant 0 : index
    %4 = vector.load %arg2[%c0_0, %c0_1] : memref<256x256xf32, #tpu.memory_space<vmem>>, vector<256x256xf32>
    %c0_2 = arith.constant 0 : index
    %c0_3 = arith.constant 0 : index
    %5 = vector.load %arg3[%c0_2, %c0_3] : memref<256x256xf32, #tpu.memory_space<vmem>>, vector<256x256xf32>
    %cst = arith.constant dense<0.000000e+00> : vector<256x256xf32>
    %6 = tpu.matmul %4, %5, %cst {dimension_numbers = #tpu.dot_dimension_numbers<[1], [0], [0], [1], [0, 0, 1, 1], [], []>} : vector<256x256xf32>, vector<256x256xf32>, vector<256x256xf32> -> vector<256x256xf32>
    %c0_4 = arith.constant 0 : index
    %c0_5 = arith.constant 0 : index
    %7 = vector.load %arg4[%c0_4, %c0_5] : memref<1x256xf32, #tpu.memory_space<vmem>>, vector<1x256xf32>
    %8 = vector.broadcast %7 : vector<1x256xf32> to vector<256x256xf32>
    %9 = arith.addf %6, %8 : vector<256x256xf32>
    %10 = arith.addf %9, %3 : vector<256x256xf32>
    %c0_6 = arith.constant 0 : index
    %c0_7 = arith.constant 0 : index
    %11 = vector.load %arg5[%c0_6, %c0_7] : memref<256x256xf32, #tpu.memory_space<vmem>>, vector<256x256xf32>
    tpu.vector_store %arg5[%c0_6, %c0_7], %10 {strides = array<i32>} : memref<256x256xf32, #tpu.memory_space<vmem>>, vector<256x256xf32>,
    return
  }
  func.func @transform_0(%arg0: i32, %arg1: i32) -> (i32, i32) {
    %c0_i32 = arith.constant 0 : i32
    %c0_i32_0 = arith.constant 0 : i32
    return %arg1, %c0_i32 : i32, i32
  }
  func.func @transform_1(%arg0: i32, %arg1: i32) -> (i32, i32) {
    %c0_i32 = arith.constant 0 : i32
    %c0_i32_0 = arith.constant 0 : i32
    return %c0_i32, %arg0 : i32, i32
  }
  func.func @transform_2(%arg0: i32, %arg1: i32) -> (i32, i32) {
    %c0_i32 = arith.constant 0 : i32
    %c0_i32_0 = arith.constant 0 : i32
    return %c0_i32, %arg0 : i32, i32
  }
  func.func @transform_3(%arg0: i32, %arg1: i32) -> (i32, i32) {
    %c0_i32 = arith.constant 0 : i32
    return %arg1, %arg0 : i32, i32
  }
}

</mosaic_0001>

<llo_original>
// kernel: tpu_custom_call.1
$region0: #{tpu_custom_call.1}
  #allocation0 [shape = 'u32[]', space=smem, size = 0x4, offset = 0x4, fixed_abs, tag = 'smem constant byte address 0x4 - core index']
  #allocation1 [shape = 'u32[72,128]{1,0:T(1,128)}', space=vmem, size = 0x9000, scoped, tag = 'internal scratch']
  %s0 = inlined_call_operand.hbm [shape: f32[512,256], index: 0, kind: input, shape index: {}]
  %s1 = inlined_call_operand.hbm [shape: f32[256,256], index: 1, kind: input, shape index: {}]
  %s2 = inlined_call_operand.hbm [shape: f32[1,256], index: 2, kind: input, shape index: {}]
  %s3 = inlined_call_operand.hbm [shape: f32[512,256], index: 3, kind: output, shape index: {}]
  %s4 = sld [smem:[#allocation0]]
  $region57: #{tpu_custom_call.1} parent=0
    _
  %s6 = ssub.s32 1, %s4
  %s7 = scalar_select 0, %s6, %s4
  $region1: #{tpu_custom_call.1} parent=0
    #allocation2 [shape = 'u8[524288]{0}', space=vmem, size = 0x80000, scoped, tag = 'input window, operand 0']
    #allocation3 [shape = 's32[2]{0}', space=sflag, size = 0x8, scoped, tag = 'scoped memory for tpu_custom_call.1']
    #allocation4 [shape = 's32[2]{0}', space=sflag, size = 0x8, scoped, tag = 'scoped memory for tpu_custom_call.1']
    #allocation5 [shape = 'u8[262144]{0}', space=vmem, size = 0x40000, scoped, tag = 'input window, operand 1, single buffered']
    #allocation6 [shape = 's32[1]{0}', space=sflag, size = 0x4, scoped, tag = 'scoped memory for tpu_custom_call.1']
    #allocation7 [shape = 'u8[1024]{0}', space=vmem, size = 0x400, scoped, tag = 'input window, operand 2, single buffered']
    #allocation8 [shape = 'u8[524288]{0}', space=vmem, size = 0x80000, scoped, tag = 'output window, operand 0']
    %8 = vsyncpa [#allocation3], 0
    %s9 = scalar_lea.sflag [#allocation3], 1
    %10 = vsyncpa %s9, 0
    %11 = vsyncpa [#allocation6], 0
    %12 = vsyncpa [#allocation4], 0
    %s13 = scalar_lea.sflag [#allocation4], 1
    %14 = vsyncpa %s13, 0
    loop: start=0, step=1, limit=4
    $region2: #{tpu_custom_call.1} parent=1 // loop_pre_header
      _
    $region3: #{tpu_custom_call.1} parent=1 // loop_header
      %s16 = sphi 0, %s20
      %p17 = scmp.ge.s32.totalorder %s16, 4
      %s23 = sphi 0, %s35
      %s24 = sphi 0, %s31
      %s25 = sphi 0, %s23
      %s26 = sphi 0, %s24
      %s27 = sphi 0, %s25
      %s28 = sphi 0, %s26
      %s38 = sphi 0, %s40
      %s41 = sphi 0, %s38
      %s42 = sphi 0, %s41
      %s58 = sphi 0, %s42
      %s64 = sphi 0, %s66
      %s67 = sphi 0, %s64
      %s68 = sphi 0, %s67
      %s84 = sphi 0, %s68
      %s90 = sphi 0, %s92
      %s93 = sphi 0, %s90
      %s94 = sphi 0, %s93
      %s110 = sphi 0, %s94
      %s118 = sphi 0, %s120
      %s121 = sphi 0, %s118
      %s122 = sphi 0, %s121
      %s138 = sphi 0, %s122
    $region4: #{tpu_custom_call.1} parent=1 // loop_header_branch
      %19 = sbr.rel (%p17) target = $region8
    $region5: #{tpu_custom_call.1} parent=1 // loop_body
      %s21 = ssub.s32 %s16, 1
      %s22 = ssub.s32 %s16, 2
      %s29 = sadd.s32 1, %s24
      %p30 = scmp.ge.s32.totalorder %s29, 2
      %s31 = scalar_select %p30, 0, %s29
      %s32 = sadd.s32 1, %s23
      %s33 = scalar_select %p30, %s32, %s23
      %p34 = scmp.ge.s32.totalorder %s33, 1
      %s35 = scalar_select %p34, 0, %s33
      %s36 = ssub.s32 %s24, %s31
      %p37 = scmp.eq.s32.totalorder %s36, 0
      %s39 = sadd.s32 %s38, 1
      %s40 = scalar_select %p37, %s38, %s39
      %p43 = pneg %p37
      %p44 = scmp.eq.s32.totalorder %s16, 1
      %p45 = por %p43, %p44
      %p46 = scmp.ne.s32.totalorder %s38, %s41
      %p47 = scmp.eq.s32.totalorder %s16, 0
      %p48 = por %p46, %p47
      %p49 = scmp.ne.s32.totalorder %s38, %s41
      %p50 = scmp.eq.s32.totalorder %s21, 1
      %p51 = por %p49, %p50
      %p52 = scmp.ne.s32.totalorder %s41, %s42
      %p53 = scmp.eq.s32.totalorder %s21, 0
      %p54 = por %p52, %p53
      %p55 = scmp.ne.s32.totalorder %s41, %s42
      %p56 = scmp.eq.s32.totalorder %s22, 1
      %p57 = por %p55, %p56
      %p59 = scmp.ne.s32.totalorder %s42, %s58
      %p60 = scmp.eq.s32.totalorder %s22, 0
      %p61 = por %p59, %p60
      %s62 = ssub.s32 %s23, %s35
      %p63 = scmp.eq.s32.totalorder %s62, 0
      %s65 = sadd.s32 %s64, 1
      %s66 = scalar_select %p63, %s64, %s65
      %p69 = pneg %p63
      %p70 = scmp.eq.s32.totalorder %s16, 1
      %p71 = por %p69, %p70
      %p72 = scmp.ne.s32.totalorder %s64, %s67
      %p73 = scmp.eq.s32.totalorder %s16, 0
      %p74 = por %p72, %p73
      %p75 = scmp.ne.s32.totalorder %s64, %s67
      %p76 = scmp.eq.s32.totalorder %s21, 1
      %p77 = por %p75, %p76
      %p78 = scmp.ne.s32.totalorder %s67, %s68
      %p79 = scmp.eq.s32.totalorder %s21, 0
      %p80 = por %p78, %p79
      %p81 = scmp.ne.s32.totalorder %s67, %s68
      %p82 = scmp.eq.s32.totalorder %s22, 1
      %p83 = por %p81, %p82
      %p85 = scmp.ne.s32.totalorder %s68, %s84
      %p86 = scmp.eq.s32.totalorder %s22, 0
      %p87 = por %p85, %p86
      %s88 = ssub.s32 %s23, %s35
      %p89 = scmp.eq.s32.totalorder %s88, 0
      %s91 = sadd.s32 %s90, 1
      %s92 = scalar_select %p89, %s90, %s91
      %p95 = pneg %p89
      %p96 = scmp.eq.s32.totalorder %s16, 1
      %p97 = por %p95, %p96
      %p98 = scmp.ne.s32.totalorder %s90, %s93
      %p99 = scmp.eq.s32.totalorder %s16, 0
      %p100 = por %p98, %p99
      %p101 = scmp.ne.s32.totalorder %s90, %s93
      %p102 = scmp.eq.s32.totalorder %s21, 1
      %p103 = por %p101, %p102
      %p104 = scmp.ne.s32.totalorder %s93, %s94
      %p105 = scmp.eq.s32.totalorder %s21, 0
      %p106 = por %p104, %p105
      %p107 = scmp.ne.s32.totalorder %s93, %s94
      %p108 = scmp.eq.s32.totalorder %s22, 1
      %p109 = por %p107, %p108
      %p111 = scmp.ne.s32.totalorder %s94, %s110
      %p112 = scmp.eq.s32.totalorder %s22, 0
      %p113 = por %p111, %p112
      %s114 = ssub.s32 %s24, %s31
      %s115 = ssub.s32 %s23, %s35
      %s116 = sor.u32 %s114, %s115
      %p117 = scmp.eq.s32.totalorder %s116, 0
      %s119 = sadd.s32 %s118, 1
      %s120 = scalar_select %p117, %s118, %s119
      %p123 = pneg %p117
      %p124 = scmp.eq.s32.totalorder %s16, 1
      %p125 = por %p123, %p124
      %p126 = scmp.ne.s32.totalorder %s118, %s121
      %p127 = scmp.eq.s32.totalorder %s16, 0
      %p128 = por %p126, %p127
      %p129 = scmp.ne.s32.totalorder %s118, %s121
      %p130 = scmp.eq.s32.totalorder %s21, 1
      %p131 = por %p129, %p130
      %p132 = scmp.ne.s32.totalorder %s121, %s122
      %p133 = scmp.eq.s32.totalorder %s21, 0
      %p134 = por %p132, %p133
      %p135 = scmp.ne.s32.totalorder %s121, %s122
      %p136 = scmp.eq.s32.totalorder %s22, 1
      %p137 = por %p135, %p136
      %p139 = scmp.ne.s32.totalorder %s122, %s138
      %p140 = scmp.eq.s32.totalorder %s22, 0
      %p141 = por %p139, %p140
      %p142 = scmp.le.s32.totalorder 1, %s16
      %p143 = scmp.lt.s32.totalorder %s16, 3
      %p144 = pnand %p142, %p143
      %p145 = pneg %p144
      // Predicated region
      $region9: #{tpu_custom_call.1} parent=5 // pred_check
        _
      $region10: #{tpu_custom_call.1} parent=5 // pred_check_branch
        %147 = sbr.rel (%p144) target = $region12
      $region11: #{tpu_custom_call.1} parent=5 // pred_region
        %s148 = ssub.s32 %s16, 1
        // Predicated region
        $region13: #{tpu_custom_call.1} parent=11 // pred_check
          %p149 = pneg %p80
        $region14: #{tpu_custom_call.1} parent=11 // pred_check_branch
          %151 = sbr.rel (%p149) target = $region16
        $region15: #{tpu_custom_call.1} parent=11 // pred_region
          %s152 = smul.u32 2, %s25
          %154 = vsyncadd [#allocation6], 0
          %s155 = smul.addr %s152, 8
          %s156 = scalar_lea.hbm %s1, %s155
          %s157 = sshll.u32 %s156, 4
          %s158 = int_to_ptr.hbm [resolvable:$true] %s157
          %s159 = sshll.u32 [#allocation5], 4
          %s160 = int_to_ptr.vmem [resolvable:$true] %s159
          %165 = dma.hbm_to_vmem [thread:$0]  %s158, 8192, %s160, [#allocation6], 256, 256, 16
        $region16: #{tpu_custom_call.1} parent=11 // pred_fallthru
          _
        // Predicated region
        $region17: #{tpu_custom_call.1} parent=11 // pred_check
          %p166 = pneg %p106
        $region18: #{tpu_custom_call.1} parent=11 // pred_check_branch
          %168 = sbr.rel (%p166) target = $region20
        $region19: #{tpu_custom_call.1} parent=11 // pred_region
          %s169 = smul.u32 2, %s25
          %171 = vsyncadd [#allocation6], 0
          %s172 = scalar_lea.hbm %s2, %s169
          %s174 = sshll.u32 %s172, 4
          %s175 = int_to_ptr.hbm [resolvable:$true] %s174
          %s176 = sshll.u32 [#allocation7], 4
          %s177 = int_to_ptr.vmem [resolvable:$true] %s176
          %179 = dma.hbm_to_vmem [thread:$0]  %s175, 32, %s177, [#allocation6]
        $region20: #{tpu_custom_call.1} parent=11 // pred_fallthru
          _
      $region12: #{tpu_custom_call.1} parent=5 // pred_fallthru
        _
      %p180 = scmp.lt.s32.totalorder %s16, 2
      // Predicated region
      $region21: #{tpu_custom_call.1} parent=5 // pred_check
        %p181 = pneg %p180
      $region22: #{tpu_custom_call.1} parent=5 // pred_check_branch
        %183 = sbr.rel (%p181) target = $region24
      $region23: #{tpu_custom_call.1} parent=5 // pred_region
        // Predicated region
        $region25: #{tpu_custom_call.1} parent=23 // pred_check
          %p184 = pneg %p48
        $region26: #{tpu_custom_call.1} parent=23 // pred_check_branch
          %186 = sbr.rel (%p184) target = $region28
        $region27: #{tpu_custom_call.1} parent=23 // pred_region
          %s187 = sand.u32 %s38, 1
          %s188 = scalar_lea.sflag [#allocation3], %s187
          %s189 = sand.u32 %s38, 1
          %s190 = smul.addr %s189, 512
          %s191 = scalar_lea.vmem [#allocation2], %s190
          %s192 = smul.u32 32, %s24
          %194 = vsyncadd %s188, 0
          %s195 = smul.addr %s192, 2
          %s196 = smul.addr %s195, 8
          %s197 = scalar_lea.hbm %s0, %s196
          %s198 = sshll.u32 %s197, 4
          %s199 = int_to_ptr.hbm [resolvable:$true] %s198
          %s200 = sshll.u32 %s191, 4
          %s201 = int_to_ptr.vmem [resolvable:$true] %s200
          %206 = dma.hbm_to_vmem [thread:$0]  %s199, 8192, %s201, %s188, 256, 256, 16
        $region28: #{tpu_custom_call.1} parent=23 // pred_fallthru
          _
      $region24: #{tpu_custom_call.1} parent=5 // pred_fallthru
        _
      %p207 = scmp.le.s32.totalorder 1, %s16
      %p208 = scmp.lt.s32.totalorder %s16, 3
      %p209 = pnand %p207, %p208
      %p210 = pneg %p209
      // Predicated region
      $region29: #{tpu_custom_call.1} parent=5 // pred_check
        _
      $region30: #{tpu_custom_call.1} parent=5 // pred_check_branch
        %212 = sbr.rel (%p209) target = $region32
      $region31: #{tpu_custom_call.1} parent=5 // pred_region
        %s213 = ssub.s32 %s16, 1
        %s214 = sand.u32 %s41, 1
        %s215 = scalar_lea.sflag [#allocation3], %s214
        %s216 = sand.u32 %s41, 1
        %s217 = smul.addr %s216, 512
        %s218 = scalar_lea.vmem [#allocation2], %s217
        // Predicated region
        $region33: #{tpu_custom_call.1} parent=31 // pred_check
          %p219 = pneg %p54
        $region34: #{tpu_custom_call.1} parent=31 // pred_check_branch
          %221 = sbr.rel (%p219) target = $region36
        $region35: #{tpu_custom_call.1} parent=31 // pred_region
          %223 = dma.done %s215, 8192
        $region36: #{tpu_custom_call.1} parent=31 // pred_fallthru
          _
        // Predicated region
        $region37: #{tpu_custom_call.1} parent=31 // pred_check
          %p224 = pneg %p80
        $region38: #{tpu_custom_call.1} parent=31 // pred_check_branch
          %226 = sbr.rel (%p224) target = $region40
        $region39: #{tpu_custom_call.1} parent=31 // pred_region
          %228 = dma.done [#allocation6], 8192
        $region40: #{tpu_custom_call.1} parent=31 // pred_fallthru
          _
        // Predicated region
        $region41: #{tpu_custom_call.1} parent=31 // pred_check
          %p229 = pneg %p106
        $region42: #{tpu_custom_call.1} parent=31 // pred_check_branch
          %231 = sbr.rel (%p229) target = $region44
        $region43: #{tpu_custom_call.1} parent=31 // pred_region
          %233 = dma.done [#allocation6], 32
        $region44: #{tpu_custom_call.1} parent=31 // pred_fallthru
          _
        %s234 = sand.u32 %s41, 1
        %s235 = scalar_lea.sflag [#allocation3], %s234
        %s236 = sand.u32 %s41, 1
        %s237 = smul.addr %s236, 512
        %s238 = scalar_lea.vmem [#allocation2], %s237
        %p239 = pneg %p54
        %p240 = pneg %p51
        %p241 = pneg %p80
        %p242 = pneg %p77
        %p243 = pneg %p106
        %p244 = pneg %p103
        %p245 = pneg %p134
        %p246 = pneg %p131
        %s247 = sand.u32 %s121, 1
        %s248 = scalar_lea.sflag [#allocation4], %s247
        %s249 = sand.u32 %s121, 1
        %s250 = smul.addr %s249, 512
        %s251 = scalar_lea.vmem [#allocation8], %s250
        %s252 = smul.u32 32, %s26
        %s253 = smul.u32 2, %s25
        %s254 = smul.u32 2, %s25
        %s255 = smul.u32 32, %s26
        %s256 = smul.u32 2, %s25
        %s257 = smul.u32 %s25, 256
        %s258 = sshra.s32 %s257, 7
        %s259 = sand.u32 %s257, 127
        %s260 = smul.addr %s258, 8
        %s261 = scalar_lea.vmem %s218, %s260 [#allocation2]
        %v262 = vld [vmem:[%s261] sm:$0xff]
        %v263 = vld [vmem:[%s261 + $0x8] sm:$0xff]
        %v264 = vld [vmem:[%s261 + $0x10] sm:$0xff]
        %v265 = vld [vmem:[%s261 + $0x18] sm:$0xff]
        %v266 = vld [vmem:[%s261 + $0x20] sm:$0xff]
        %v267 = vld [vmem:[%s261 + $0x28] sm:$0xff]
        %v268 = vld [vmem:[%s261 + $0x30] sm:$0xff]
        %v269 = vld [vmem:[%s261 + $0x38] sm:$0xff]
        %v270 = vld [vmem:[%s261 + $0x40] sm:$0xff]
        %v271 = vld [vmem:[%s261 + $0x48] sm:$0xff]
        %v272 = vld [vmem:[%s261 + $0x50] sm:$0xff]
        %v273 = vld [vmem:[%s261 + $0x58] sm:$0xff]
        %v274 = vld [vmem:[%s261 + $0x60] sm:$0xff]
        %v275 = vld [vmem:[%s261 + $0x68] sm:$0xff]
        %v276 = vld [vmem:[%s261 + $0x70] sm:$0xff]
        %v277 = vld [vmem:[%s261 + $0x78] sm:$0xff]
        %v278 = vld [vmem:[%s261 + $0x80] sm:$0xff]
        %v279 = vld [vmem:[%s261 + $0x88] sm:$0xff]
        %v280 = vld [vmem:[%s261 + $0x90] sm:$0xff]
        %v281 = vld [vmem:[%s261 + $0x98] sm:$0xff]
        %v282 = vld [vmem:[%s261 + $0xa0] sm:$0xff]
        %v283 = vld [vmem:[%s261 + $0xa8] sm:$0xff]
        %v284 = vld [vmem:[%s261 + $0xb0] sm:$0xff]
        %v285 = vld [vmem:[%s261 + $0xb8] sm:$0xff]
        %v286 = vld [vmem:[%s261 + $0xc0] sm:$0xff]
        %v287 = vld [vmem:[%s261 + $0xc8] sm:$0xff]
        %v288 = vld [vmem:[%s261 + $0xd0] sm:$0xff]
        %v289 = vld [vmem:[%s261 + $0xd8] sm:$0xff]
        %v290 = vld [vmem:[%s261 + $0xe0] sm:$0xff]
        %v291 = vld [vmem:[%s261 + $0xe8] sm:$0xff]
        %v292 = vld [vmem:[%s261 + $0xf0] sm:$0xff]
        %v293 = vld [vmem:[%s261 + $0xf8] sm:$0xff]
        %v294 = vld [vmem:[%s261 + $0x100] sm:$0xff]
        %v295 = vld [vmem:[%s261 + $0x108] sm:$0xff]
        %v296 = vld [vmem:[%s261 + $0x110] sm:$0xff]
        %v297 = vld [vmem:[%s261 + $0x118] sm:$0xff]
        %v298 = vld [vmem:[%s261 + $0x120] sm:$0xff]
        %v299 = vld [vmem:[%s261 + $0x128] sm:$0xff]
        %v300 = vld [vmem:[%s261 + $0x130] sm:$0xff]
        %v301 = vld [vmem:[%s261 + $0x138] sm:$0xff]
        %v302 = vld [vmem:[%s261 + $0x140] sm:$0xff]
        %v303 = vld [vmem:[%s261 + $0x148] sm:$0xff]
        %v304 = vld [vmem:[%s261 + $0x150] sm:$0xff]
        %v305 = vld [vmem:[%s261 + $0x158] sm:$0xff]
        %v306 = vld [vmem:[%s261 + $0x160] sm:$0xff]
        %v307 = vld [vmem:[%s261 + $0x168] sm:$0xff]
        %v308 = vld [vmem:[%s261 + $0x170] sm:$0xff]
        %v309 = vld [vmem:[%s261 + $0x178] sm:$0xff]
        %v310 = vld [vmem:[%s261 + $0x180] sm:$0xff]
        %v311 = vld [vmem:[%s261 + $0x188] sm:$0xff]
        %v312 = vld [vmem:[%s261 + $0x190] sm:$0xff]
        %v313 = vld [vmem:[%s261 + $0x198] sm:$0xff]
        %v314 = vld [vmem:[%s261 + $0x1a0] sm:$0xff]
        %v315 = vld [vmem:[%s261 + $0x1a8] sm:$0xff]
        %v316 = vld [vmem:[%s261 + $0x1b0] sm:$0xff]
        %v317 = vld [vmem:[%s261 + $0x1b8] sm:$0xff]
        %v318 = vld [vmem:[%s261 + $0x1c0] sm:$0xff]
        %v319 = vld [vmem:[%s261 + $0x1c8] sm:$0xff]
        %v320 = vld [vmem:[%s261 + $0x1d0] sm:$0xff]
        %v321 = vld [vmem:[%s261 + $0x1d8] sm:$0xff]
        %v322 = vld [vmem:[%s261 + $0x1e0] sm:$0xff]
        %v323 = vld [vmem:[%s261 + $0x1e8] sm:$0xff]
        %v324 = vld [vmem:[%s261 + $0x1f0] sm:$0xff]
        %v325 = vld [vmem:[%s261 + $0x1f8] sm:$0xff]
        %v326 = vld [vmem:[%s218] sm:$0xff]
        %v327 = vld [vmem:[%s218 + $0x8] sm:$0xff]
        %v328 = vld [vmem:[%s218 + $0x10] sm:$0xff]
        %v329 = vld [vmem:[%s218 + $0x18] sm:$0xff]
        %v330 = vld [vmem:[%s218 + $0x20] sm:$0xff]
        %v331 = vld [vmem:[%s218 + $0x28] sm:$0xff]
        %v332 = vld [vmem:[%s218 + $0x30] sm:$0xff]
        %v333 = vld [vmem:[%s218 + $0x38] sm:$0xff]
        %v334 = vld [vmem:[%s218 + $0x40] sm:$0xff]
        %v335 = vld [vmem:[%s218 + $0x48] sm:$0xff]
        %v336 = vld [vmem:[%s218 + $0x50] sm:$0xff]
        %v337 = vld [vmem:[%s218 + $0x58] sm:$0xff]
        %v338 = vld [vmem:[%s218 + $0x60] sm:$0xff]
        %v339 = vld [vmem:[%s218 + $0x68] sm:$0xff]
        %v340 = vld [vmem:[%s218 + $0x70] sm:$0xff]
        %v341 = vld [vmem:[%s218 + $0x78] sm:$0xff]
        %v342 = vld [vmem:[%s218 + $0x80] sm:$0xff]
        %v343 = vld [vmem:[%s218 + $0x88] sm:$0xff]
        %v344 = vld [vmem:[%s218 + $0x90] sm:$0xff]
        %v345 = vld [vmem:[%s218 + $0x98] sm:$0xff]
        %v346 = vld [vmem:[%s218 + $0xa0] sm:$0xff]
        %v347 = vld [vmem:[%s218 + $0xa8] sm:$0xff]
        %v348 = vld [vmem:[%s218 + $0xb0] sm:$0xff]
        %v349 = vld [vmem:[%s218 + $0xb8] sm:$0xff]
        %v350 = vld [vmem:[%s218 + $0xc0] sm:$0xff]
        %v351 = vld [vmem:[%s218 + $0xc8] sm:$0xff]
        %v352 = vld [vmem:[%s218 + $0xd0] sm:$0xff]
        %v353 = vld [vmem:[%s218 + $0xd8] sm:$0xff]
        %v354 = vld [vmem:[%s218 + $0xe0] sm:$0xff]
        %v355 = vld [vmem:[%s218 + $0xe8] sm:$0xff]
        %v356 = vld [vmem:[%s218 + $0xf0] sm:$0xff]
        %v357 = vld [vmem:[%s218 + $0xf8] sm:$0xff]
        %v358 = vld [vmem:[%s218 + $0x100] sm:$0xff]
        %v359 = vld [vmem:[%s218 + $0x108] sm:$0xff]
        %v360 = vld [vmem:[%s218 + $0x110] sm:$0xff]
        %v361 = vld [vmem:[%s218 + $0x118] sm:$0xff]
        %v362 = vld [vmem:[%s218 + $0x120] sm:$0xff]
        %v363 = vld [vmem:[%s218 + $0x128] sm:$0xff]
        %v364 = vld [vmem:[%s218 + $0x130] sm:$0xff]
        %v365 = vld [vmem:[%s218 + $0x138] sm:$0xff]
        %v366 = vld [vmem:[%s218 + $0x140] sm:$0xff]
        %v367 = vld [vmem:[%s218 + $0x148] sm:$0xff]
        %v368 = vld [vmem:[%s218 + $0x150] sm:$0xff]
        %v369 = vld [vmem:[%s218 + $0x158] sm:$0xff]
        %v370 = vld [vmem:[%s218 + $0x160] sm:$0xff]
        %v371 = vld [vmem:[%s218 + $0x168] sm:$0xff]
        %v372 = vld [vmem:[%s218 + $0x170] sm:$0xff]
        %v373 = vld [vmem:[%s218 + $0x178] sm:$0xff]
        %v374 = vld [vmem:[%s218 + $0x180] sm:$0xff]
        %v375 = vld [vmem:[%s218 + $0x188] sm:$0xff]
        %v376 = vld [vmem:[%s218 + $0x190] sm:$0xff]
        %v377 = vld [vmem:[%s218 + $0x198] sm:$0xff]
        %v378 = vld [vmem:[%s218 + $0x1a0] sm:$0xff]
        %v379 = vld [vmem:[%s218 + $0x1a8] sm:$0xff]
        %v380 = vld [vmem:[%s218 + $0x1b0] sm:$0xff]
        %v381 = vld [vmem:[%s218 + $0x1b8] sm:$0xff]
        %v382 = vld [vmem:[%s218 + $0x1c0] sm:$0xff]
        %v383 = vld [vmem:[%s218 + $0x1c8] sm:$0xff]
        %v384 = vld [vmem:[%s218 + $0x1d0] sm:$0xff]
        %v385 = vld [vmem:[%s218 + $0x1d8] sm:$0xff]
        %v386 = vld [vmem:[%s218 + $0x1e0] sm:$0xff]
        %v387 = vld [vmem:[%s218 + $0x1e8] sm:$0xff]
        %v388 = vld [vmem:[%s218 + $0x1f0] sm:$0xff]
        %v389 = vld [vmem:[%s218 + $0x1f8] sm:$0xff]
        %v390 = vld [vmem:[#allocation5] sm:$0xff]
        %v391 = vld [vmem:[#allocation5 + $0x8] sm:$0xff]
        %v392 = vld [vmem:[#allocation5 + $0x10] sm:$0xff]
        %v393 = vld [vmem:[#allocation5 + $0x18] sm:$0xff]
        %v394 = vld [vmem:[#allocation5 + $0x20] sm:$0xff]
        %v395 = vld [vmem:[#allocation5 + $0x28] sm:$0xff]
        %v396 = vld [vmem:[#allocation5 + $0x30] sm:$0xff]
        %v397 = vld [vmem:[#allocation5 + $0x38] sm:$0xff]
        %v398 = vld [vmem:[#allocation5 + $0x40] sm:$0xff]
        %v399 = vld [vmem:[#allocation5 + $0x48] sm:$0xff]
        %v400 = vld [vmem:[#allocation5 + $0x50] sm:$0xff]
        %v401 = vld [vmem:[#allocation5 + $0x58] sm:$0xff]
        %v402 = vld [vmem:[#allocation5 + $0x60] sm:$0xff]
        %v403 = vld [vmem:[#allocation5 + $0x68] sm:$0xff]
        %v404 = vld [vmem:[#allocation5 + $0x70] sm:$0xff]
        %v405 = vld [vmem:[#allocation5 + $0x78] sm:$0xff]
        %v406 = vld [vmem:[#allocation5 + $0x80] sm:$0xff]
        %v407 = vld [vmem:[#allocation5 + $0x88] sm:$0xff]
        %v408 = vld [vmem:[#allocation5 + $0x90] sm:$0xff]
        %v409 = vld [vmem:[#allocation5 + $0x98] sm:$0xff]
        %v410 = vld [vmem:[#allocation5 + $0xa0] sm:$0xff]
        %v411 = vld [vmem:[#allocation5 + $0xa8] sm:$0xff]
        %v412 = vld [vmem:[#allocation5 + $0xb0] sm:$0xff]
        %v413 = vld [vmem:[#allocation5 + $0xb8] sm:$0xff]
        %v414 = vld [vmem:[#allocation5 + $0xc0] sm:$0xff]
        %v415 = vld [vmem:[#allocation5 + $0xc8] sm:$0xff]
        %v416 = vld [vmem:[#allocation5 + $0xd0] sm:$0xff]
        %v417 = vld [vmem:[#allocation5 + $0xd8] sm:$0xff]
        %v418 = vld [vmem:[#allocation5 + $0xe0] sm:$0xff]
        %v419 = vld [vmem:[#allocation5 + $0xe8] sm:$0xff]
        %v420 = vld [vmem:[#allocation5 + $0xf0] sm:$0xff]
        %v421 = vld [vmem:[#allocation5 + $0xf8] sm:$0xff]
        %v422 = vld [vmem:[#allocation5 + $0x100] sm:$0xff]
        %v423 = vld [vmem:[#allocation5 + $0x108] sm:$0xff]
        %v424 = vld [vmem:[#allocation5 + $0x110] sm:$0xff]
        %v425 = vld [vmem:[#allocation5 + $0x118] sm:$0xff]
        %v426 = vld [vmem:[#allocation5 + $0x120] sm:$0xff]
        %v427 = vld [vmem:[#allocation5 + $0x128] sm:$0xff]
        %v428 = vld [vmem:[#allocation5 + $0x130] sm:$0xff]
        %v429 = vld [vmem:[#allocation5 + $0x138] sm:$0xff]
        %v430 = vld [vmem:[#allocation5 + $0x140] sm:$0xff]
        %v431 = vld [vmem:[#allocation5 + $0x148] sm:$0xff]
        %v432 = vld [vmem:[#allocation5 + $0x150] sm:$0xff]
        %v433 = vld [vmem:[#allocation5 + $0x158] sm:$0xff]
        %v434 = vld [vmem:[#allocation5 + $0x160] sm:$0xff]
        %v435 = vld [vmem:[#allocation5 + $0x168] sm:$0xff]
        %v436 = vld [vmem:[#allocation5 + $0x170] sm:$0xff]
        %v437 = vld [vmem:[#allocation5 + $0x178] sm:$0xff]
        %v438 = vld [vmem:[#allocation5 + $0x180] sm:$0xff]
        %v439 = vld [vmem:[#allocation5 + $0x188] sm:$0xff]
        %v440 = vld [vmem:[#allocation5 + $0x190] sm:$0xff]
        %v441 = vld [vmem:[#allocation5 + $0x198] sm:$0xff]
        %v442 = vld [vmem:[#allocation5 + $0x1a0] sm:$0xff]
        %v443 = vld [vmem:[#allocation5 + $0x1a8] sm:$0xff]
        %v444 = vld [vmem:[#allocation5 + $0x1b0] sm:$0xff]
        %v445 = vld [vmem:[#allocation5 + $0x1b8] sm:$0xff]
        %v446 = vld [vmem:[#allocation5 + $0x1c0] sm:$0xff]
        %v447 = vld [vmem:[#allocation5 + $0x1c8] sm:$0xff]
        %v448 = vld [vmem:[#allocation5 + $0x1d0] sm:$0xff]
        %v449 = vld [vmem:[#allocation5 + $0x1d8] sm:$0xff]
        %v450 = vld [vmem:[#allocation5 + $0x1e0] sm:$0xff]
        %v451 = vld [vmem:[#allocation5 + $0x1e8] sm:$0xff]
        %v452 = vld [vmem:[#allocation5 + $0x1f0] sm:$0xff]
        %v453 = vld [vmem:[#allocation5 + $0x1f8] sm:$0xff]
        %v454 = vld [vmem:[#allocation7] sm:$0x3]
        %v456 = vperm.slane %v454, 0
        %v457 = vperm.slane %v454, 1
        %460 = vmatpush.msra.mxu0 %v420
        %461 = vmatpush.msra.mxu0 %v418
        %462 = vmatpush.msra.mxu0 %v416
        %463 = vmatpush.msra.mxu0 %v414
        %464 = vmatpush.msra.mxu0 %v412
        %465 = vmatpush.msra.mxu0 %v410
        %466 = vmatpush.msra.mxu0 %v408
        %467 = vmatpush.msra.mxu0 %v406
        %468 = vmatpush.msra.mxu0 %v404
        %469 = vmatpush.msra.mxu0 %v402
        %470 = vmatpush.msra.mxu0 %v400
        %471 = vmatpush.msra.mxu0 %v398
        %472 = vmatpush.msra.mxu0 %v396
        %473 = vmatpush.msra.mxu0 %v394
        %474 = vmatpush.msra.mxu0 %v392
        %475 = vmatpush.msra.mxu0 %v390
        %476 = vmatmul.f32.gmra.mxu0 %v326
        %v477 = vpop.f32.mrf.mxu0
        %v478 = vadd.f32 %v456, %v477
        %479 = vmatmul.f32.gmra.mxu0 %v328
        %v480 = vpop.f32.mrf.mxu0
        %v481 = vadd.f32 %v456, %v480
        %482 = vmatmul.f32.gmra.mxu0 %v330
        %v483 = vpop.f32.mrf.mxu0
        %v484 = vadd.f32 %v456, %v483
        %485 = vmatmul.f32.gmra.mxu0 %v332
        %v486 = vpop.f32.mrf.mxu0
        %v487 = vadd.f32 %v456, %v486
        %488 = vmatmul.f32.gmra.mxu0 %v334
        %v489 = vpop.f32.mrf.mxu0
        %v490 = vadd.f32 %v456, %v489
        %491 = vmatmul.f32.gmra.mxu0 %v336
        %v492 = vpop.f32.mrf.mxu0
        %v493 = vadd.f32 %v456, %v492
        %494 = vmatmul.f32.gmra.mxu0 %v338
        %v495 = vpop.f32.mrf.mxu0
        %v496 = vadd.f32 %v456, %v495
        %497 = vmatmul.f32.gmra.mxu0 %v340
        %v498 = vpop.f32.mrf.mxu0
        %v499 = vadd.f32 %v456, %v498
        %500 = vmatmul.f32.gmra.mxu0 %v342
        %v501 = vpop.f32.mrf.mxu0
        %v502 = vadd.f32 %v456, %v501
        %503 = vmatmul.f32.gmra.mxu0 %v344
        %v504 = vpop.f32.mrf.mxu0
        %v505 = vadd.f32 %v456, %v504
        %506 = vmatmul.f32.gmra.mxu0 %v346
        %v507 = vpop.f32.mrf.mxu0
        %v508 = vadd.f32 %v456, %v507
        %509 = vmatmul.f32.gmra.mxu0 %v348
        %v510 = vpop.f32.mrf.mxu0
        %v511 = vadd.f32 %v456, %v510
        %512 = vmatmul.f32.gmra.mxu0 %v350
        %v513 = vpop.f32.mrf.mxu0
        %v514 = vadd.f32 %v456, %v513
        %515 = vmatmul.f32.gmra.mxu0 %v352
        %v516 = vpop.f32.mrf.mxu0
        %v517 = vadd.f32 %v456, %v516
        %518 = vmatmul.f32.gmra.mxu0 %v354
        %v519 = vpop.f32.mrf.mxu0
        %v520 = vadd.f32 %v456, %v519
        %521 = vmatmul.f32.gmra.mxu0 %v356
        %v522 = vpop.f32.mrf.mxu0
        %v523 = vadd.f32 %v456, %v522
        %524 = vmatmul.f32.gmra.mxu0 %v358
        %v525 = vpop.f32.mrf.mxu0
        %v526 = vadd.f32 %v456, %v525
        %527 = vmatmul.f32.gmra.mxu0 %v360
        %v528 = vpop.f32.mrf.mxu0
        %v529 = vadd.f32 %v456, %v528
        %530 = vmatmul.f32.gmra.mxu0 %v362
        %v531 = vpop.f32.mrf.mxu0
        %v532 = vadd.f32 %v456, %v531
        %533 = vmatmul.f32.gmra.mxu0 %v364
        %v534 = vpop.f32.mrf.mxu0
        %v535 = vadd.f32 %v456, %v534
        %536 = vmatmul.f32.gmra.mxu0 %v366
        %v537 = vpop.f32.mrf.mxu0
        %v538 = vadd.f32 %v456, %v537
        %539 = vmatmul.f32.gmra.mxu0 %v368
        %v540 = vpop.f32.mrf.mxu0
        %v541 = vadd.f32 %v456, %v540
        %542 = vmatmul.f32.gmra.mxu0 %v370
        %v543 = vpop.f32.mrf.mxu0
        %v544 = vadd.f32 %v456, %v543
        %545 = vmatmul.f32.gmra.mxu0 %v372
        %v546 = vpop.f32.mrf.mxu0
        %v547 = vadd.f32 %v456, %v546
        %548 = vmatmul.f32.gmra.mxu0 %v374
        %v549 = vpop.f32.mrf.mxu0
        %v550 = vadd.f32 %v456, %v549
        %551 = vmatmul.f32.gmra.mxu0 %v376
        %v552 = vpop.f32.mrf.mxu0
        %v553 = vadd.f32 %v456, %v552
        %554 = vmatmul.f32.gmra.mxu0 %v378
        %v555 = vpop.f32.mrf.mxu0
        %v556 = vadd.f32 %v456, %v555
        %557 = vmatmul.f32.gmra.mxu0 %v380
        %v558 = vpop.f32.mrf.mxu0
        %v559 = vadd.f32 %v456, %v558
        %560 = vmatmul.f32.gmra.mxu0 %v382
        %v561 = vpop.f32.mrf.mxu0
        %v562 = vadd.f32 %v456, %v561
        %563 = vmatmul.f32.gmra.mxu0 %v384
        %v564 = vpop.f32.mrf.mxu0
        %v565 = vadd.f32 %v456, %v564
        %566 = vmatmul.f32.gmra.mxu0 %v386
        %v567 = vpop.f32.mrf.mxu0
        %v568 = vadd.f32 %v456, %v567
        %569 = vmatmul.f32.gmra.mxu0 %v388
        %v570 = vpop.f32.mrf.mxu0
        %v571 = vadd.f32 %v456, %v570
        %572 = vdwg.mxu0
        %573 = vmatpush.msra.mxu0 %v452
        %574 = vmatpush.msra.mxu0 %v450
        %575 = vmatpush.msra.mxu0 %v448
        %576 = vmatpush.msra.mxu0 %v446
        %577 = vmatpush.msra.mxu0 %v444
        %578 = vmatpush.msra.mxu0 %v442
        %579 = vmatpush.msra.mxu0 %v440
        %580 = vmatpush.msra.mxu0 %v438
        %581 = vmatpush.msra.mxu0 %v436
        %582 = vmatpush.msra.mxu0 %v434
        %583 = vmatpush.msra.mxu0 %v432
        %584 = vmatpush.msra.mxu0 %v430
        %585 = vmatpush.msra.mxu0 %v428
        %586 = vmatpush.msra.mxu0 %v426
        %587 = vmatpush.msra.mxu0 %v424
        %588 = vmatpush.msra.mxu0 %v422
        %589 = vmatmul.f32.gmra.mxu0 %v327
        %v590 = vpop.f32.mrf.mxu0
        %v591 = vadd.f32 %v478, %v590
        %592 = vmatmul.f32.gmra.mxu0 %v329
        %v593 = vpop.f32.mrf.mxu0
        %v594 = vadd.f32 %v481, %v593
        %595 = vmatmul.f32.gmra.mxu0 %v331
        %v596 = vpop.f32.mrf.mxu0
        %v597 = vadd.f32 %v484, %v596
        %598 = vmatmul.f32.gmra.mxu0 %v333
        %v599 = vpop.f32.mrf.mxu0
        %v600 = vadd.f32 %v487, %v599
        %601 = vmatmul.f32.gmra.mxu0 %v335
        %v602 = vpop.f32.mrf.mxu0
        %v603 = vadd.f32 %v490, %v602
        %604 = vmatmul.f32.gmra.mxu0 %v337
        %v605 = vpop.f32.mrf.mxu0
        %v606 = vadd.f32 %v493, %v605
        %607 = vmatmul.f32.gmra.mxu0 %v339
        %v608 = vpop.f32.mrf.mxu0
        %v609 = vadd.f32 %v496, %v608
        %610 = vmatmul.f32.gmra.mxu0 %v341
        %v611 = vpop.f32.mrf.mxu0
        %v612 = vadd.f32 %v499, %v611
        %613 = vmatmul.f32.gmra.mxu0 %v343
        %v614 = vpop.f32.mrf.mxu0
        %v615 = vadd.f32 %v502, %v614
        %616 = vmatmul.f32.gmra.mxu0 %v345
        %v617 = vpop.f32.mrf.mxu0
        %v618 = vadd.f32 %v505, %v617
        %619 = vmatmul.f32.gmra.mxu0 %v347
        %v620 = vpop.f32.mrf.mxu0
        %v621 = vadd.f32 %v508, %v620
        %622 = vmatmul.f32.gmra.mxu0 %v349
        %v623 = vpop.f32.mrf.mxu0
        %v624 = vadd.f32 %v511, %v623
        %625 = vmatmul.f32.gmra.mxu0 %v351
        %v626 = vpop.f32.mrf.mxu0
        %v627 = vadd.f32 %v514, %v626
        %628 = vmatmul.f32.gmra.mxu0 %v353
        %v629 = vpop.f32.mrf.mxu0
        %v630 = vadd.f32 %v517, %v629
        %631 = vmatmul.f32.gmra.mxu0 %v355
        %v632 = vpop.f32.mrf.mxu0
        %v633 = vadd.f32 %v520, %v632
        %634 = vmatmul.f32.gmra.mxu0 %v357
        %v635 = vpop.f32.mrf.mxu0
        %v636 = vadd.f32 %v523, %v635
        %637 = vmatmul.f32.gmra.mxu0 %v359
        %v638 = vpop.f32.mrf.mxu0
        %v639 = vadd.f32 %v526, %v638
        %640 = vmatmul.f32.gmra.mxu0 %v361
        %v641 = vpop.f32.mrf.mxu0
        %v642 = vadd.f32 %v529, %v641
        %643 = vmatmul.f32.gmra.mxu0 %v363
        %v644 = vpop.f32.mrf.mxu0
        %v645 = vadd.f32 %v532, %v644
        %646 = vmatmul.f32.gmra.mxu0 %v365
        %v647 = vpop.f32.mrf.mxu0
        %v648 = vadd.f32 %v535, %v647
        %649 = vmatmul.f32.gmra.mxu0 %v367
        %v650 = vpop.f32.mrf.mxu0
        %v651 = vadd.f32 %v538, %v650
        %652 = vmatmul.f32.gmra.mxu0 %v369
        %v653 = vpop.f32.mrf.mxu0
        %v654 = vadd.f32 %v541, %v653
        %655 = vmatmul.f32.gmra.mxu0 %v371
        %v656 = vpop.f32.mrf.mxu0
        %v657 = vadd.f32 %v544, %v656
        %658 = vmatmul.f32.gmra.mxu0 %v373
        %v659 = vpop.f32.mrf.mxu0
        %v660 = vadd.f32 %v547, %v659
        %661 = vmatmul.f32.gmra.mxu0 %v375
        %v662 = vpop.f32.mrf.mxu0
        %v663 = vadd.f32 %v550, %v662
        %664 = vmatmul.f32.gmra.mxu0 %v377
        %v665 = vpop.f32.mrf.mxu0
        %v666 = vadd.f32 %v553, %v665
        %667 = vmatmul.f32.gmra.mxu0 %v379
        %v668 = vpop.f32.mrf.mxu0
        %v669 = vadd.f32 %v556, %v668
        %670 = vmatmul.f32.gmra.mxu0 %v381
        %v671 = vpop.f32.mrf.mxu0
        %v672 = vadd.f32 %v559, %v671
        %673 = vmatmul.f32.gmra.mxu0 %v383
        %v674 = vpop.f32.mrf.mxu0
        %v675 = vadd.f32 %v562, %v674
        %676 = vmatmul.f32.gmra.mxu0 %v385
        %v677 = vpop.f32.mrf.mxu0
        %v678 = vadd.f32 %v565, %v677
        %679 = vmatmul.f32.gmra.mxu0 %v387
        %v680 = vpop.f32.mrf.mxu0
        %v681 = vadd.f32 %v568, %v680
        %682 = vmatmul.f32.gmra.mxu0 %v389
        %v683 = vpop.f32.mrf.mxu0
        %v684 = vadd.f32 %v571, %v683
        %685 = vdwg.mxu0
        %686 = vmatpush.msra.mxu0 %v421
        %687 = vmatpush.msra.mxu0 %v419
        %688 = vmatpush.msra.mxu0 %v417
        %689 = vmatpush.msra.mxu0 %v415
        %690 = vmatpush.msra.mxu0 %v413
        %691 = vmatpush.msra.mxu0 %v411
        %692 = vmatpush.msra.mxu0 %v409
        %693 = vmatpush.msra.mxu0 %v407
        %694 = vmatpush.msra.mxu0 %v405
        %695 = vmatpush.msra.mxu0 %v403
        %696 = vmatpush.msra.mxu0 %v401
        %697 = vmatpush.msra.mxu0 %v399
        %698 = vmatpush.msra.mxu0 %v397
        %699 = vmatpush.msra.mxu0 %v395
        %700 = vmatpush.msra.mxu0 %v393
        %701 = vmatpush.msra.mxu0 %v391
        %702 = vmatmul.f32.gmra.mxu0 %v326
        %v703 = vpop.f32.mrf.mxu0
        %v704 = vadd.f32 %v457, %v703
        %705 = vmatmul.f32.gmra.mxu0 %v328
        %v706 = vpop.f32.mrf.mxu0
        %v707 = vadd.f32 %v457, %v706
        %708 = vmatmul.f32.gmra.mxu0 %v330
        %v709 = vpop.f32.mrf.mxu0
        %v710 = vadd.f32 %v457, %v709
        %711 = vmatmul.f32.gmra.mxu0 %v332
        %v712 = vpop.f32.mrf.mxu0
        %v713 = vadd.f32 %v457, %v712
        %714 = vmatmul.f32.gmra.mxu0 %v334
        %v715 = vpop.f32.mrf.mxu0
        %v716 = vadd.f32 %v457, %v715
        %717 = vmatmul.f32.gmra.mxu0 %v336
        %v718 = vpop.f32.mrf.mxu0
        %v719 = vadd.f32 %v457, %v718
        %720 = vmatmul.f32.gmra.mxu0 %v338
        %v721 = vpop.f32.mrf.mxu0
        %v722 = vadd.f32 %v457, %v721
        %723 = vmatmul.f32.gmra.mxu0 %v340
        %v724 = vpop.f32.mrf.mxu0
        %v725 = vadd.f32 %v457, %v724
        %726 = vmatmul.f32.gmra.mxu0 %v342
        %v727 = vpop.f32.mrf.mxu0
        %v728 = vadd.f32 %v457, %v727
        %729 = vmatmul.f32.gmra.mxu0 %v344
        %v730 = vpop.f32.mrf.mxu0
        %v731 = vadd.f32 %v457, %v730
        %732 = vmatmul.f32.gmra.mxu0 %v346
        %v733 = vpop.f32.mrf.mxu0
        %v734 = vadd.f32 %v457, %v733
        %735 = vmatmul.f32.gmra.mxu0 %v348
        %v736 = vpop.f32.mrf.mxu0
        %v737 = vadd.f32 %v457, %v736
        %738 = vmatmul.f32.gmra.mxu0 %v350
        %v739 = vpop.f32.mrf.mxu0
        %v740 = vadd.f32 %v457, %v739
        %741 = vmatmul.f32.gmra.mxu0 %v352
        %v742 = vpop.f32.mrf.mxu0
        %v743 = vadd.f32 %v457, %v742
        %744 = vmatmul.f32.gmra.mxu0 %v354
        %v745 = vpop.f32.mrf.mxu0
        %v746 = vadd.f32 %v457, %v745
        %747 = vmatmul.f32.gmra.mxu0 %v356
        %v748 = vpop.f32.mrf.mxu0
        %v749 = vadd.f32 %v457, %v748
        %750 = vmatmul.f32.gmra.mxu0 %v358
        %v751 = vpop.f32.mrf.mxu0
        %v752 = vadd.f32 %v457, %v751
        %753 = vmatmul.f32.gmra.mxu0 %v360
        %v754 = vpop.f32.mrf.mxu0
        %v755 = vadd.f32 %v457, %v754
        %756 = vmatmul.f32.gmra.mxu0 %v362
        %v757 = vpop.f32.mrf.mxu0
        %v758 = vadd.f32 %v457, %v757
        %759 = vmatmul.f32.gmra.mxu0 %v364
        %v760 = vpop.f32.mrf.mxu0
        %v761 = vadd.f32 %v457, %v760
        %762 = vmatmul.f32.gmra.mxu0 %v366
        %v763 = vpop.f32.mrf.mxu0
        %v764 = vadd.f32 %v457, %v763
        %765 = vmatmul.f32.gmra.mxu0 %v368
        %v766 = vpop.f32.mrf.mxu0
        %v767 = vadd.f32 %v457, %v766
        %768 = vmatmul.f32.gmra.mxu0 %v370
        %v769 = vpop.f32.mrf.mxu0
        %v770 = vadd.f32 %v457, %v769
        %771 = vmatmul.f32.gmra.mxu0 %v372
        %v772 = vpop.f32.mrf.mxu0
        %v773 = vadd.f32 %v457, %v772
        %774 = vmatmul.f32.gmra.mxu0 %v374
        %v775 = vpop.f32.mrf.mxu0
        %v776 = vadd.f32 %v457, %v775
        %777 = vmatmul.f32.gmra.mxu0 %v376
        %v778 = vpop.f32.mrf.mxu0
        %v779 = vadd.f32 %v457, %v778
        %780 = vmatmul.f32.gmra.mxu0 %v378
        %v781 = vpop.f32.mrf.mxu0
        %v782 = vadd.f32 %v457, %v781
        %783 = vmatmul.f32.gmra.mxu0 %v380
        %v784 = vpop.f32.mrf.mxu0
        %v785 = vadd.f32 %v457, %v784
        %786 = vmatmul.f32.gmra.mxu0 %v382
        %v787 = vpop.f32.mrf.mxu0
        %v788 = vadd.f32 %v457, %v787
        %789 = vmatmul.f32.gmra.mxu0 %v384
        %v790 = vpop.f32.mrf.mxu0
        %v791 = vadd.f32 %v457, %v790
        %792 = vmatmul.f32.gmra.mxu0 %v386
        %v793 = vpop.f32.mrf.mxu0
        %v794 = vadd.f32 %v457, %v793
        %795 = vmatmul.f32.gmra.mxu0 %v388
        %v796 = vpop.f32.mrf.mxu0
        %v797 = vadd.f32 %v457, %v796
        %798 = vdwg.mxu0
        %799 = vmatpush.msra.mxu0 %v453
        %800 = vmatpush.msra.mxu0 %v451
        %801 = vmatpush.msra.mxu0 %v449
        %802 = vmatpush.msra.mxu0 %v447
        %803 = vmatpush.msra.mxu0 %v445
        %804 = vmatpush.msra.mxu0 %v443
        %805 = vmatpush.msra.mxu0 %v441
        %806 = vmatpush.msra.mxu0 %v439
        %807 = vmatpush.msra.mxu0 %v437
        %808 = vmatpush.msra.mxu0 %v435
        %809 = vmatpush.msra.mxu0 %v433
        %810 = vmatpush.msra.mxu0 %v431
        %811 = vmatpush.msra.mxu0 %v429
        %812 = vmatpush.msra.mxu0 %v427
        %813 = vmatpush.msra.mxu0 %v425
        %814 = vmatpush.msra.mxu0 %v423
        %815 = vmatmul.f32.gmra.mxu0 %v327
        %v816 = vpop.f32.mrf.mxu0
        %v817 = vadd.f32 %v704, %v816
        %818 = vmatmul.f32.gmra.mxu0 %v329
        %v819 = vpop.f32.mrf.mxu0
        %v820 = vadd.f32 %v707, %v819
        %821 = vmatmul.f32.gmra.mxu0 %v331
        %v822 = vpop.f32.mrf.mxu0
        %v823 = vadd.f32 %v710, %v822
        %824 = vmatmul.f32.gmra.mxu0 %v333
        %v825 = vpop.f32.mrf.mxu0
        %v826 = vadd.f32 %v713, %v825
        %827 = vmatmul.f32.gmra.mxu0 %v335
        %v828 = vpop.f32.mrf.mxu0
        %v829 = vadd.f32 %v716, %v828
        %830 = vmatmul.f32.gmra.mxu0 %v337
        %v831 = vpop.f32.mrf.mxu0
        %v832 = vadd.f32 %v719, %v831
        %833 = vmatmul.f32.gmra.mxu0 %v339
        %v834 = vpop.f32.mrf.mxu0
        %v835 = vadd.f32 %v722, %v834
        %836 = vmatmul.f32.gmra.mxu0 %v341
        %v837 = vpop.f32.mrf.mxu0
        %v838 = vadd.f32 %v725, %v837
        %839 = vmatmul.f32.gmra.mxu0 %v343
        %v840 = vpop.f32.mrf.mxu0
        %v841 = vadd.f32 %v728, %v840
        %842 = vmatmul.f32.gmra.mxu0 %v345
        %v843 = vpop.f32.mrf.mxu0
        %v844 = vadd.f32 %v731, %v843
        %845 = vmatmul.f32.gmra.mxu0 %v347
        %v846 = vpop.f32.mrf.mxu0
        %v847 = vadd.f32 %v734, %v846
        %848 = vmatmul.f32.gmra.mxu0 %v349
        %v849 = vpop.f32.mrf.mxu0
        %v850 = vadd.f32 %v737, %v849
        %851 = vmatmul.f32.gmra.mxu0 %v351
        %v852 = vpop.f32.mrf.mxu0
        %v853 = vadd.f32 %v740, %v852
        %854 = vmatmul.f32.gmra.mxu0 %v353
        %v855 = vpop.f32.mrf.mxu0
        %v856 = vadd.f32 %v743, %v855
        %857 = vmatmul.f32.gmra.mxu0 %v355
        %v858 = vpop.f32.mrf.mxu0
        %v859 = vadd.f32 %v746, %v858
        %860 = vmatmul.f32.gmra.mxu0 %v357
        %v861 = vpop.f32.mrf.mxu0
        %v862 = vadd.f32 %v749, %v861
        %863 = vmatmul.f32.gmra.mxu0 %v359
        %v864 = vpop.f32.mrf.mxu0
        %v865 = vadd.f32 %v752, %v864
        %866 = vmatmul.f32.gmra.mxu0 %v361
        %v867 = vpop.f32.mrf.mxu0
        %v868 = vadd.f32 %v755, %v867
        %869 = vmatmul.f32.gmra.mxu0 %v363
        %v870 = vpop.f32.mrf.mxu0
        %v871 = vadd.f32 %v758, %v870
        %872 = vmatmul.f32.gmra.mxu0 %v365
        %v873 = vpop.f32.mrf.mxu0
        %v874 = vadd.f32 %v761, %v873
        %875 = vmatmul.f32.gmra.mxu0 %v367
        %v876 = vpop.f32.mrf.mxu0
        %v877 = vadd.f32 %v764, %v876
        %878 = vmatmul.f32.gmra.mxu0 %v369
        %v879 = vpop.f32.mrf.mxu0
        %v880 = vadd.f32 %v767, %v879
        %881 = vmatmul.f32.gmra.mxu0 %v371
        %v882 = vpop.f32.mrf.mxu0
        %v883 = vadd.f32 %v770, %v882
        %884 = vmatmul.f32.gmra.mxu0 %v373
        %v885 = vpop.f32.mrf.mxu0
        %v886 = vadd.f32 %v773, %v885
        %887 = vmatmul.f32.gmra.mxu0 %v375
        %v888 = vpop.f32.mrf.mxu0
        %v889 = vadd.f32 %v776, %v888
        %890 = vmatmul.f32.gmra.mxu0 %v377
        %v891 = vpop.f32.mrf.mxu0
        %v892 = vadd.f32 %v779, %v891
        %893 = vmatmul.f32.gmra.mxu0 %v379
        %v894 = vpop.f32.mrf.mxu0
        %v895 = vadd.f32 %v782, %v894
        %896 = vmatmul.f32.gmra.mxu0 %v381
        %v897 = vpop.f32.mrf.mxu0
        %v898 = vadd.f32 %v785, %v897
        %899 = vmatmul.f32.gmra.mxu0 %v383
        %v900 = vpop.f32.mrf.mxu0
        %v901 = vadd.f32 %v788, %v900
        %902 = vmatmul.f32.gmra.mxu0 %v385
        %v903 = vpop.f32.mrf.mxu0
        %v904 = vadd.f32 %v791, %v903
        %905 = vmatmul.f32.gmra.mxu0 %v387
        %v906 = vpop.f32.mrf.mxu0
        %v907 = vadd.f32 %v794, %v906
        %908 = vmatmul.f32.gmra.mxu0 %v389
        %v909 = vpop.f32.mrf.mxu0
        %v910 = vadd.f32 %v797, %v909
        %911 = vdwg.mxu0
        %v912 = vadd.f32 %v591, %v262
        %v913 = vadd.f32 %v817, %v263
        %v914 = vadd.f32 %v594, %v264
        %v915 = vadd.f32 %v820, %v265
        %v916 = vadd.f32 %v597, %v266
        %v917 = vadd.f32 %v823, %v267
        %v918 = vadd.f32 %v600, %v268
        %v919 = vadd.f32 %v826, %v269
        %v920 = vadd.f32 %v603, %v270
        %v921 = vadd.f32 %v829, %v271
        %v922 = vadd.f32 %v606, %v272
        %v923 = vadd.f32 %v832, %v273
        %v924 = vadd.f32 %v609, %v274
        %v925 = vadd.f32 %v835, %v275
        %v926 = vadd.f32 %v612, %v276
        %v927 = vadd.f32 %v838, %v277
        %v928 = vadd.f32 %v615, %v278
        %v929 = vadd.f32 %v841, %v279
        %v930 = vadd.f32 %v618, %v280
        %v931 = vadd.f32 %v844, %v281
        %v932 = vadd.f32 %v621, %v282
        %v933 = vadd.f32 %v847, %v283
        %v934 = vadd.f32 %v624, %v284
        %v935 = vadd.f32 %v850, %v285
        %v936 = vadd.f32 %v627, %v286
        %v937 = vadd.f32 %v853, %v287
        %v938 = vadd.f32 %v630, %v288
        %v939 = vadd.f32 %v856, %v289
        %v940 = vadd.f32 %v633, %v290
        %v941 = vadd.f32 %v859, %v291
        %v942 = vadd.f32 %v636, %v292
        %v943 = vadd.f32 %v862, %v293
        %v944 = vadd.f32 %v639, %v294
        %v945 = vadd.f32 %v865, %v295
        %v946 = vadd.f32 %v642, %v296
        %v947 = vadd.f32 %v868, %v297
        %v948 = vadd.f32 %v645, %v298
        %v949 = vadd.f32 %v871, %v299
        %v950 = vadd.f32 %v648, %v300
        %v951 = vadd.f32 %v874, %v301
        %v952 = vadd.f32 %v651, %v302
        %v953 = vadd.f32 %v877, %v303
        %v954 = vadd.f32 %v654, %v304
        %v955 = vadd.f32 %v880, %v305
        %v956 = vadd.f32 %v657, %v306
        %v957 = vadd.f32 %v883, %v307
        %v958 = vadd.f32 %v660, %v308
        %v959 = vadd.f32 %v886, %v309
        %v960 = vadd.f32 %v663, %v310
        %v961 = vadd.f32 %v889, %v311
        %v962 = vadd.f32 %v666, %v312
        %v963 = vadd.f32 %v892, %v313
        %v964 = vadd.f32 %v669, %v314
        %v965 = vadd.f32 %v895, %v315
        %v966 = vadd.f32 %v672, %v316
        %v967 = vadd.f32 %v898, %v317
        %v968 = vadd.f32 %v675, %v318
        %v969 = vadd.f32 %v901, %v319
        %v970 = vadd.f32 %v678, %v320
        %v971 = vadd.f32 %v904, %v321
        %v972 = vadd.f32 %v681, %v322
        %v973 = vadd.f32 %v907, %v323
        %v974 = vadd.f32 %v684, %v324
        %v975 = vadd.f32 %v910, %v325
        %976 = vst [vmem:[%s251] sm:$0xff] %v912
        %977 = vst [vmem:[%s251 + $0x8] sm:$0xff] %v913
        %978 = vst [vmem:[%s251 + $0x10] sm:$0xff] %v914
        %979 = vst [vmem:[%s251 + $0x18] sm:$0xff] %v915
        %980 = vst [vmem:[%s251 + $0x20] sm:$0xff] %v916
        %981 = vst [vmem:[%s251 + $0x28] sm:$0xff] %v917
        %982 = vst [vmem:[%s251 + $0x30] sm:$0xff] %v918
        %983 = vst [vmem:[%s251 + $0x38] sm:$0xff] %v919
        %984 = vst [vmem:[%s251 + $0x40] sm:$0xff] %v920
        %985 = vst [vmem:[%s251 + $0x48] sm:$0xff] %v921
        %986 = vst [vmem:[%s251 + $0x50] sm:$0xff] %v922
        %987 = vst [vmem:[%s251 + $0x58] sm:$0xff] %v923
        %988 = vst [vmem:[%s251 + $0x60] sm:$0xff] %v924
        %989 = vst [vmem:[%s251 + $0x68] sm:$0xff] %v925
        %990 = vst [vmem:[%s251 + $0x70] sm:$0xff] %v926
        %991 = vst [vmem:[%s251 + $0x78] sm:$0xff] %v927
        %992 = vst [vmem:[%s251 + $0x80] sm:$0xff] %v928
        %993 = vst [vmem:[%s251 + $0x88] sm:$0xff] %v929
        %994 = vst [vmem:[%s251 + $0x90] sm:$0xff] %v930
        %995 = vst [vmem:[%s251 + $0x98] sm:$0xff] %v931
        %996 = vst [vmem:[%s251 + $0xa0] sm:$0xff] %v932
        %997 = vst [vmem:[%s251 + $0xa8] sm:$0xff] %v933
        %998 = vst [vmem:[%s251 + $0xb0] sm:$0xff] %v934
        %999 = vst [vmem:[%s251 + $0xb8] sm:$0xff] %v935
        %1000 = vst [vmem:[%s251 + $0xc0] sm:$0xff] %v936
        %1001 = vst [vmem:[%s251 + $0xc8] sm:$0xff] %v937
        %1002 = vst [vmem:[%s251 + $0xd0] sm:$0xff] %v938
        %1003 = vst [vmem:[%s251 + $0xd8] sm:$0xff] %v939
        %1004 = vst [vmem:[%s251 + $0xe0] sm:$0xff] %v940
        %1005 = vst [vmem:[%s251 + $0xe8] sm:$0xff] %v941
        %1006 = vst [vmem:[%s251 + $0xf0] sm:$0xff] %v942
        %1007 = vst [vmem:[%s251 + $0xf8] sm:$0xff] %v943
        %1008 = vst [vmem:[%s251 + $0x100] sm:$0xff] %v944
        %1009 = vst [vmem:[%s251 + $0x108] sm:$0xff] %v945
        %1010 = vst [vmem:[%s251 + $0x110] sm:$0xff] %v946
        %1011 = vst [vmem:[%s251 + $0x118] sm:$0xff] %v947
        %1012 = vst [vmem:[%s251 + $0x120] sm:$0xff] %v948
        %1013 = vst [vmem:[%s251 + $0x128] sm:$0xff] %v949
        %1014 = vst [vmem:[%s251 + $0x130] sm:$0xff] %v950
        %1015 = vst [vmem:[%s251 + $0x138] sm:$0xff] %v951
        %1016 = vst [vmem:[%s251 + $0x140] sm:$0xff] %v952
        %1017 = vst [vmem:[%s251 + $0x148] sm:$0xff] %v953
        %1018 = vst [vmem:[%s251 + $0x150] sm:$0xff] %v954
        %1019 = vst [vmem:[%s251 + $0x158] sm:$0xff] %v955
        %1020 = vst [vmem:[%s251 + $0x160] sm:$0xff] %v956
        %1021 = vst [vmem:[%s251 + $0x168] sm:$0xff] %v957
        %1022 = vst [vmem:[%s251 + $0x170] sm:$0xff] %v958
        %1023 = vst [vmem:[%s251 + $0x178] sm:$0xff] %v959
        %1024 = vst [vmem:[%s251 + $0x180] sm:$0xff] %v960
        %1025 = vst [vmem:[%s251 + $0x188] sm:$0xff] %v961
        %1026 = vst [vmem:[%s251 + $0x190] sm:$0xff] %v962
        %1027 = vst [vmem:[%s251 + $0x198] sm:$0xff] %v963
        %1028 = vst [vmem:[%s251 + $0x1a0] sm:$0xff] %v964
        %1029 = vst [vmem:[%s251 + $0x1a8] sm:$0xff] %v965
        %1030 = vst [vmem:[%s251 + $0x1b0] sm:$0xff] %v966
        %1031 = vst [vmem:[%s251 + $0x1b8] sm:$0xff] %v967
        %1032 = vst [vmem:[%s251 + $0x1c0] sm:$0xff] %v968
        %1033 = vst [vmem:[%s251 + $0x1c8] sm:$0xff] %v969
        %1034 = vst [vmem:[%s251 + $0x1d0] sm:$0xff] %v970
        %1035 = vst [vmem:[%s251 + $0x1d8] sm:$0xff] %v971
        %1036 = vst [vmem:[%s251 + $0x1e0] sm:$0xff] %v972
        %1037 = vst [vmem:[%s251 + $0x1e8] sm:$0xff] %v973
        %1038 = vst [vmem:[%s251 + $0x1f0] sm:$0xff] %v974
        %1039 = vst [vmem:[%s251 + $0x1f8] sm:$0xff] %v975
        %s1040 = sand.u32 %s121, 1
        %s1041 = scalar_lea.sflag [#allocation4], %s1040
        %s1042 = sand.u32 %s121, 1
        %s1043 = smul.addr %s1042, 512
        %s1044 = scalar_lea.vmem [#allocation8], %s1043
        // Predicated region
        $region45: #{tpu_custom_call.1} parent=31 // pred_check
          %p1045 = pneg %p131
        $region46: #{tpu_custom_call.1} parent=31 // pred_check_branch
          %1047 = sbr.rel (%p1045) target = $region48
        $region47: #{tpu_custom_call.1} parent=31 // pred_region
          %s1048 = smul.u32 32, %s26
          %s1049 = smul.u32 2, %s25
          %1051 = vsyncadd %s1041, 0
          %s1052 = smul.addr %s1048, 2
          %s1053 = sadd.s32 %s1049, %s1052
          %s1054 = smul.addr %s1053, 8
          %s1055 = scalar_lea.hbm %s3, %s1054
          %s1056 = sshll.u32 %s1044, 4
          %s1057 = int_to_ptr.vmem [resolvable:$true] %s1056
          %s1058 = sshll.u32 %s1055, 4
          %s1059 = int_to_ptr.hbm [resolvable:$true] %s1058
          %1064 = dma.vmem_to_hbm [thread:$0]  %s1057, 8192, %s1059, %s1041, 256, 256, 16
        $region48: #{tpu_custom_call.1} parent=31 // pred_fallthru
          _
      $region32: #{tpu_custom_call.1} parent=5 // pred_fallthru
        _
      %p1065 = scmp.le.s32.totalorder 2, %s16
      // Predicated region
      $region49: #{tpu_custom_call.1} parent=5 // pred_check
        %p1066 = pneg %p1065
      $region50: #{tpu_custom_call.1} parent=5 // pred_check_branch
        %1068 = sbr.rel (%p1066) target = $region52
      $region51: #{tpu_custom_call.1} parent=5 // pred_region
        %s1069 = ssub.s32 %s16, 2
        // Predicated region
        $region53: #{tpu_custom_call.1} parent=51 // pred_check
          %p1070 = pneg %p137
        $region54: #{tpu_custom_call.1} parent=51 // pred_check_branch
          %1072 = sbr.rel (%p1070) target = $region56
        $region55: #{tpu_custom_call.1} parent=51 // pred_region
          %s1073 = sand.u32 %s122, 1
          %s1074 = scalar_lea.sflag [#allocation4], %s1073
          %s1075 = sand.u32 %s122, 1
          %s1076 = smul.addr %s1075, 512
          %s1077 = scalar_lea.vmem [#allocation8], %s1076
          %1079 = dma.done %s1074, 8192
        $region56: #{tpu_custom_call.1} parent=51 // pred_fallthru
          _
      $region52: #{tpu_custom_call.1} parent=5 // pred_fallthru
        _
    $region6: #{tpu_custom_call.1} parent=1 // loop_footer
      %s20 = sadd.s32 1, %s16
    $region7: #{tpu_custom_call.1} parent=1 // loop_footer_branch
      %15 = sbr.rel target = $region3
    $region8: #{tpu_custom_call.1} parent=1 // loop_exit
      _
    %1080 = vsyncpa [#allocation3], 1
    %s1081 = scalar_lea.sflag [#allocation3], 1
    %1082 = vsyncpa %s1081, 1
    %1083 = vsyncpa [#allocation6], 1
    %1084 = vsyncpa [#allocation4], 1
    %s1085 = scalar_lea.sflag [#allocation4], 1
    %1086 = vsyncpa %s1085, 1

</llo_original>
